<compile_context>
chip_gen: v6e
topology: v6e:2x2x1
jax: 0.10.0
libtpu: 0.0.40
codegen_flags: <defaults>
</compile_context>

<pallas_src>
import functools

import jax
import jax.numpy as jnp
from jax import lax
from jax.experimental import pallas as pl
from jax.experimental.pallas import tpu as pltpu


def _conv_stats_kernel(xt_ref, w_ref, v_ref, y_ref, psum_ref, psumsq_ref, *,
                       plan, Cin, Cout, TT):
    """Pass 1: im2col Conv1d + masked per-channel sum / sum-of-squares partials.

    xt_ref : (1, 1, S*Cin, W)   halo time tile, S streams stacked along channels
    w_ref  : (Cout, K*Cin)      2-D im2col weight matrix
    v_ref  : (1, S, TT)         valid mask (1.0 = real frame)
    y_ref  : (1, S*Cout, TT)    conv output (f32)
    psum_ref / psumsq_ref : (1, 1, Cout, 1)  masked stat partials for this tile
    """
    S = len(plan)
    w = w_ref[...]                        # [Cout, K*Cin]
    xt = xt_ref[0, 0]                     # [S*Cin, W]
    v = v_ref[0]                          # [S, TT]

    # Build the im2col operand for all S streams and run ONE MXU matmul per grid step
    # (single weight push / single result drain instead of S).
    cols = []
    for s_out in range(S):
        pieces = [xt[src * Cin:(src + 1) * Cin, sh:sh + TT] for (src, sh) in plan[s_out]]
        cols.append(jnp.concatenate(pieces, axis=0) if len(pieces) > 1 else pieces[0])
    xcol = jnp.concatenate(cols, axis=1) if S > 1 else cols[0]        # [K*Cin, S*TT]
    y = jnp.dot(w, xcol, preferred_element_type=jnp.float32)          # [Cout, S*TT] f32

    psum = jnp.zeros((Cout, 1), jnp.float32)
    psumsq = jnp.zeros((Cout, 1), jnp.float32)
    for s_out in range(S):
        ys = y[:, s_out * TT:(s_out + 1) * TT]                        # [Cout, TT]
        y_ref[0, s_out * Cout:(s_out + 1) * Cout, :] = ys
        ym = ys * v[s_out:s_out + 1, :]                               # masked
        psum = psum + jnp.sum(ym, axis=1, keepdims=True)
        psumsq = psumsq + jnp.sum(ym * ys, axis=1, keepdims=True)
    psum_ref[0, 0] = psum
    psumsq_ref[0, 0] = psumsq


def _norm_act_pool_kernel(y_ref, v_ref, scale_ref, shift_ref, o_ref, *,
                          S, Cout, use_glu, act_fun):
    """Pass 2: masked batch-norm affine + activation/GLU (+ MaxPool as max over streams)."""
    scale = scale_ref[...]      # [Cout, 1]   gamma * rsqrt(var + eps)
    shift = shift_ref[...]      # [Cout, 1]   beta  - mean * gamma * rsqrt(var + eps)
    y = y_ref[0]                # [S*Cout, TT] f32 conv output
    v = v_ref[0]                # [S, TT]
    res = None
    for s in range(S):
        ys = y[s * Cout:(s + 1) * Cout, :]
        vs = v[s:s + 1, :]
        # masked_scatter semantics: padded frames keep the raw conv output.
        z = jnp.where(vs > 0.5, ys * scale + shift, ys)
        if use_glu:
            half = Cout // 2
            z = z[:half, :] * jax.nn.sigmoid(z[half:, :])
        elif act_fun == "relu":
            z = jnp.maximum(z, 0.0)
        else:  # swish / SiLU
            z = z * jax.nn.sigmoid(z)
        # S == 2 -> streams are even/odd time positions: max == MaxPool1d(kernel_size=2).
        res = z if res is None else jnp.maximum(res, z)
    o_ref[0] = res.astype(o_ref.dtype)


def tcn_block_forward(x, len_video, weight_oik, gamma, beta, *,
                      kernel_size, use_pool=True, use_glu=False, act_fun="relu",
                      eps=1e-5, conv_dtype=jnp.bfloat16, time_tile=512):
    """x: [B, Cin, T] f32, len_video: [B] int32, weight_oik: [Cout, Cin, K] (torch layout)."""
    B, Cin, T = x.shape
    Cout = weight_oik.shape[0]
    K = kernel_size
    if K == 3:
        pad = 1
    elif K == 5:
        pad = 2
    else:
        raise ValueError("We only support kernel_size = 3 or 5")
    if act_fun not in ("relu", "swish"):
        raise ValueError("We only support relu and swish act fun.")
    assert time_tile % 128 == 0

    # ---- tiling: S time streams (2 when pooling: even/odd), per-stream length Ls ---------
    S = 2 if use_pool else 1
    Ls_min = -(-T // S)                                  # ceil(T / S)
    TTs = time_tile if Ls_min >= time_tile else Ls_min   # lane-dense (>=128) for real sizes
    n_t = -(-Ls_min // TTs)
    Ls = n_t * TTs
    T_pad = Ls * S
    halo = (K - 1) if S == 1 else pad
    W = TTs + halo

    # ---- wrapper-side layout plumbing (plain XLA) ------------------------------------------
    # zero-pad: conv 'same' padding + round the time axis up to the tile grid.
    xp = jnp.pad(x.astype(jnp.float32), ((0, 0), (0, 0), (pad, pad + (T_pad - T))))
    if S == 2:
        # de-interleave even/odd time positions so pooling needs no strided access in-kernel
        xs = jnp.concatenate([xp[:, :, 0::2], xp[:, :, 1::2]], axis=1)   # [B, 2*Cin, Ls+pad]
    else:
        xs = xp                                                          # [B, Cin, Ls+K-1]
    # halo time tiles (only `halo` columns duplicated per tile)
    xt = jnp.stack([xs[:, :, i * TTs: i * TTs + W] for i in range(n_t)], axis=1)
    xt = xt.astype(conv_dtype)                                           # [B, n_t, S*Cin, W]

    # weight -> 2-D im2col matrix: w2d[o, k*Cin + c] = weight[o, c, k]
    w2d = jnp.transpose(weight_oik, (0, 2, 1)).reshape(Cout, K * Cin).astype(conv_dtype)

    # create_mask(len_video): True for padding -> pass the complementary valid mask
    t_idx = jnp.arange(T_pad, dtype=jnp.int32)
    valid_full = (t_idx[None, :] < len_video[:, None]).astype(jnp.float32)   # [B, T_pad]
    if S == 2:
        v = jnp.stack([valid_full[:, 0::2], valid_full[:, 1::2]], axis=1)    # [B, 2, Ls]
    else:
        v = valid_full[:, None, :]                                           # [B, 1, Ls]

    # per-tap (source stream, time shift) plan for the im2col build
    if S == 2:
        plan = (tuple((0 if k % 2 == 0 else 1, k // 2) for k in range(K)),         # even outs
                tuple((1 if k % 2 == 0 else 0, (k + 1) // 2) for k in range(K)))    # odd outs
    else:
        plan = (tuple((0, k) for k in range(K)),)

    cparams = pltpu.CompilerParams(
        dimension_semantics=("parallel", "parallel"),
        vmem_limit_bytes=48 * 1024 * 1024)   # headroom below v7x's 64 MiB physical VMEM

    # ---- pass 1: conv + masked stat partials ------------------------------------------------
    kern1 = functools.partial(_conv_stats_kernel, plan=plan, Cin=Cin, Cout=Cout, TT=TTs)
    y_i, psum, psumsq = pl.pallas_call(
        kern1,
        grid=(B, n_t),
        in_specs=[
            pl.BlockSpec((1, 1, S * Cin, W), lambda b, i: (b, i, 0, 0)),
            pl.BlockSpec((Cout, K * Cin), lambda b, i: (0, 0)),
            pl.BlockSpec((1, S, TTs), lambda b, i: (b, 0, i)),
        ],
        out_specs=(
            pl.BlockSpec((1, S * Cout, TTs), lambda b, i: (b, 0, i)),
            pl.BlockSpec((1, 1, Cout, 1), lambda b, i: (b, i, 0, 0)),
            pl.BlockSpec((1, 1, Cout, 1), lambda b, i: (b, i, 0, 0)),
        ),
        out_shape=(
            jax.ShapeDtypeStruct((B, S * Cout, Ls), jnp.float32),
            jax.ShapeDtypeStruct((B, n_t, Cout, 1), jnp.float32),
            jax.ShapeDtypeStruct((B, n_t, Cout, 1), jnp.float32),
        ),
        compiler_params=cparams,
    )(xt, w2d, v)

    # ---- tiny [Cout]-sized reduction of the stat partials (plain JAX, f32) ------------------
    cnt = jnp.maximum(jnp.sum(valid_full), 1.0)
    mean = jnp.sum(psum[..., 0], axis=(0, 1)) / cnt
    var = jnp.maximum(jnp.sum(psumsq[..., 0], axis=(0, 1)) / cnt - mean * mean, 0.0)
    inv = lax.rsqrt(var + eps)
    g = gamma.astype(jnp.float32)
    scale = (g * inv).reshape(Cout, 1)
    shift = (beta.astype(jnp.float32) - mean * g * inv).reshape(Cout, 1)

    # ---- pass 2: normalize + activation/GLU + MaxPool ---------------------------------------
    C_eff = Cout // 2 if use_glu else Cout
    kern2 = functools.partial(_norm_act_pool_kernel, S=S, Cout=Cout,
                              use_glu=use_glu, act_fun=act_fun)
    out_full = pl.pallas_call(
        kern2,
        grid=(B, n_t),
        in_specs=[
            pl.BlockSpec((1, S * Cout, TTs), lambda b, i: (b, 0, i)),
            pl.BlockSpec((1, S, TTs), lambda b, i: (b, 0, i)),
            pl.BlockSpec((Cout, 1), lambda b, i: (0, 0)),
            pl.BlockSpec((Cout, 1), lambda b, i: (0, 0)),
        ],
        out_specs=pl.BlockSpec((1, C_eff, TTs), lambda b, i: (b, 0, i)),
        out_shape=jax.ShapeDtypeStruct((B, C_eff, Ls), jnp.float32),
        compiler_params=cparams,
    )(y_i, v, scale, shift)

    T_out = T // 2 if use_pool else T
    out = out_full[:, :, :T_out]
    new_len = len_video // 2 if use_pool else len_video
    return out, new_len


def _reference_forward(x, len_video, weight_oik, gamma, beta, *,
                       kernel_size, use_pool, use_glu, act_fun, eps=1e-5):
    """Plain-JAX reference mirroring the module semantics (correctness check)."""
    pad = 1 if kernel_size == 3 else 2
    y = lax.conv_general_dilated(
        x, weight_oik, window_strides=(1,), padding=[(pad, pad)],
        dimension_numbers=("NCH", "OIH", "NCH"))
    B, Cout, T = y.shape
    valid = (jnp.arange(T)[None, :] < len_video[:, None]).astype(jnp.float32)
    vm = valid[:, None, :]
    cnt = jnp.maximum(valid.sum(), 1.0)
    mean = (y * vm).sum(axis=(0, 2), keepdims=True) / cnt
    var = (((y - mean) ** 2) * vm).sum(axis=(0, 2), keepdims=True) / cnt
    normed = (y - mean) * lax.rsqrt(var + eps) * gamma.reshape(1, -1, 1) + beta.reshape(1, -1, 1)
    y = vm * normed + (1.0 - vm) * y
    if use_glu:
        half = Cout // 2
        y = y[:, :half] * jax.nn.sigmoid(y[:, half:])
    else:
        y = jnp.maximum(y, 0.0) if act_fun == "relu" else y * jax.nn.sigmoid(y)
    if use_pool:
        y = y.reshape(B, y.shape[1], T // 2, 2).max(axis=-1)
        len_video = len_video // 2
    return y, len_video


if __name__ == "__main__":
    key = jax.random.PRNGKey(0)
    kx, kw, kg, kb, kx2, kw2, kg2, kb2 = jax.random.split(key, 8)

    # ---- Config A: kernel_size=3, ReLU, MaxPool (module defaults) --------------------------
    B, Cin, Cout, T, K = 2, 4, 8, 16, 3
    x = jax.random.normal(kx, (B, Cin, T), dtype=jnp.float32)
    len_video = jnp.array([16, 10], dtype=jnp.int32)
    weight = 0.1 * jax.random.normal(kw, (Cout, Cin, K), dtype=jnp.float32)   # torch Conv1d layout
    gamma = 1.0 + 0.1 * jax.random.normal(kg, (Cout,), dtype=jnp.float32)
    beta = 0.1 * jax.random.normal(kb, (Cout,), dtype=jnp.float32)

    ref_out, ref_len = _reference_forward(
        x, len_video, weight, gamma, beta,
        kernel_size=K, use_pool=True, use_glu=False, act_fun="relu")

    # f32 MXU inputs -> tight check.
    out, new_len = tcn_block_forward(
        x, len_video, weight, gamma, beta, kernel_size=K,
        use_pool=True, use_glu=False, act_fun="relu", conv_dtype=jnp.float32)
    out = jax.block_until_ready(out)
    assert out.shape == (B, Cout, T // 2), out.shape
    assert bool(jnp.all(jax.block_until_ready(new_len) == ref_len))
    assert bool(jnp.allclose(out, ref_out, atol=2e-3, rtol=2e-3)), "f32 mismatch vs reference"

    # bf16 MXU inputs (the default fast path on v6e/v7x; f32 accumulation) -> looser check.
    out_bf, _ = tcn_block_forward(
        x, len_video, weight, gamma, beta, kernel_size=K,
        use_pool=True, use_glu=False, act_fun="relu")
    out_bf = jax.block_until_ready(out_bf)
    assert bool(jnp.allclose(out_bf, ref_out, atol=5e-2, rtol=5e-2)), "bf16 mismatch vs reference"

    # ---- Config B: kernel_size=5, GLU + swish, no pooling ----------------------------------
    B2, Cin2, Cout2, T2, K2 = 2, 4, 16, 16, 5     # Cout2 already includes the GLU doubling
    x2 = jax.random.normal(kx2, (B2, Cin2, T2), dtype=jnp.float32)
    len_video2 = jnp.array([12, 16], dtype=jnp.int32)
    weight2 = 0.1 * jax.random.normal(kw2, (Cout2, Cin2, K2), dtype=jnp.float32)
    gamma2 = 1.0 + 0.1 * jax.random.normal(kg2, (Cout2,), dtype=jnp.float32)
    beta2 = 0.1 * jax.random.normal(kb2, (Cout2,), dtype=jnp.float32)

    ref_out2, _ = _reference_forward(
        x2, len_video2, weight2, gamma2, beta2,
        kernel_size=K2, use_pool=False, use_glu=True, act_fun="swish")
    out2, new_len2 = tcn_block_forward(
        x2, len_video2, weight2, gamma2, beta2, kernel_size=K2,
        use_pool=False, use_glu=True, act_fun="swish", conv_dtype=jnp.float32)
    out2 = jax.block_until_ready(out2)
    assert out2.shape == (B2, Cout2 // 2, T2), out2.shape
    assert bool(jnp.all(jax.block_until_ready(new_len2) == len_video2))
    assert bool(jnp.allclose(out2, ref_out2, atol=2e-3, rtol=2e-3)), "GLU mismatch vs reference"

    print("KERNEL_OK")
</pallas_src>

<mosaic_0001>
module attributes {stable_mosaic.version = 11 : i64} {
  func.func @_conv_stats_kernel(%arg0: i32, %arg1: i32, %arg2: memref<1x1x8x9xf32, #tpu.memory_space<vmem>>, %arg3: memref<8x12xf32, #tpu.memory_space<vmem>>, %arg4: memref<1x2x8xf32, #tpu.memory_space<vmem>>, %arg5: memref<1x16x8xf32, #tpu.memory_space<vmem>>, %arg6: memref<1x1x8x1xf32, #tpu.memory_space<vmem>>, %arg7: memref<1x1x8x1xf32, #tpu.memory_space<vmem>>) attributes {dimension_semantics = [#tpu.dimension_semantics<parallel>, #tpu.dimension_semantics<parallel>], iteration_bounds = array<i64: 2, 1>, scalar_prefetch = 0 : i64, scratch_operands = 0 : i64, tpu.core_type = #tpu.core_type<tc>, window_params = [{transform_indices = @transform_0, window_bounds = array<i64: 1, 1, 8, 9>}, {pipeline_mode = #tpu.pipeline_mode<synchronous>, transform_indices = @transform_1, window_bounds = array<i64: 8, 12>}, {transform_indices = @transform_2, window_bounds = array<i64: 1, 2, 8>}, {transform_indices = @transform_3, window_bounds = array<i64: 1, 16, 8>}, {transform_indices = @transform_4, window_bounds = array<i64: 1, 1, 8, 1>}, {transform_indices = @transform_5, window_bounds = array<i64: 1, 1, 8, 1>}]} {
    %c0 = arith.constant 0 : index
    %c0_0 = arith.constant 0 : index
    %0 = vector.load %arg3[%c0, %c0_0] : memref<8x12xf32, #tpu.memory_space<vmem>>, vector<8x12xf32>
    %c0_1 = arith.constant 0 : index
    %c0_2 = arith.constant 0 : index
    %c0_3 = arith.constant 0 : index
    %c0_4 = arith.constant 0 : index
    %1 = vector.load %arg2[%c0_1, %c0_2, %c0_3, %c0_4] : memref<1x1x8x9xf32, #tpu.memory_space<vmem>>, vector<1x1x8x9xf32>
    %2 = vector.shape_cast %1 : vector<1x1x8x9xf32> to vector<8x9xf32>
    %c0_5 = arith.constant 0 : index
    %c0_6 = arith.constant 0 : index
    %c0_7 = arith.constant 0 : index
    %3 = vector.load %arg4[%c0_5, %c0_6, %c0_7] : memref<1x2x8xf32, #tpu.memory_space<vmem>>, vector<1x2x8xf32>
    %4 = vector.shape_cast %3 : vector<1x2x8xf32> to vector<2x8xf32>
    %5 = vector.extract_strided_slice %2 {offsets = [0, 0], sizes = [4, 8], strides = [1, 1]} : vector<8x9xf32> to vector<4x8xf32>
    %6 = vector.extract_strided_slice %2 {offsets = [4, 0], sizes = [4, 8], strides = [1, 1]} : vector<8x9xf32> to vector<4x8xf32>
    %7 = vector.extract_strided_slice %2 {offsets = [0, 1], sizes = [4, 8], strides = [1, 1]} : vector<8x9xf32> to vector<4x8xf32>
    %8 = tpu.concatenate %5, %6, %7 in 0 : vector<4x8xf32>, vector<4x8xf32>, vector<4x8xf32> -> vector<12x8xf32>
    %9 = vector.extract_strided_slice %2 {offsets = [4, 0], sizes = [4, 8], strides = [1, 1]} : vector<8x9xf32> to vector<4x8xf32>
    %10 = vector.extract_strided_slice %2 {offsets = [0, 1], sizes = [4, 8], strides = [1, 1]} : vector<8x9xf32> to vector<4x8xf32>
    %11 = vector.extract_strided_slice %2 {offsets = [4, 1], sizes = [4, 8], strides = [1, 1]} : vector<8x9xf32> to vector<4x8xf32>
    %12 = tpu.concatenate %9, %10, %11 in 0 : vector<4x8xf32>, vector<4x8xf32>, vector<4x8xf32> -> vector<12x8xf32>
    %13 = tpu.concatenate %8, %12 in 1 : vector<12x8xf32>, vector<12x8xf32> -> vector<12x16xf32>
    %cst = arith.constant dense<0.000000e+00> : vector<8x16xf32>
    %14 = tpu.matmul %0, %13, %cst {dimension_numbers = #tpu.dot_dimension_numbers<[1], [0], [0], [1], [0, 0, 1, 1], [], []>} : vector<8x12xf32>, vector<12x16xf32>, vector<8x16xf32> -> vector<8x16xf32>
    %cst_8 = arith.constant 0.000000e+00 : f32
    %15 = vector.broadcast %cst_8 : f32 to vector<8x1xf32>
    %cst_9 = arith.constant 0.000000e+00 : f32
    %16 = vector.broadcast %cst_9 : f32 to vector<8x1xf32>
    %17 = vector.extract_strided_slice %14 {offsets = [0, 0], sizes = [8, 8], strides = [1, 1]} : vector<8x16xf32> to vector<8x8xf32>
    %c0_10 = arith.constant 0 : index
    %c0_11 = arith.constant 0 : index
    %c0_12 = arith.constant 0 : index
    %18 = vector.load %arg5[%c0_10, %c0_11, %c0_12] : memref<1x16x8xf32, #tpu.memory_space<vmem>>, vector<1x8x8xf32>
    %19 = vector.shape_cast %18 : vector<1x8x8xf32> to vector<8x8xf32>
    %20 = vector.shape_cast %17 : vector<8x8xf32> to vector<1x8x8xf32>
    tpu.vector_store %arg5[%c0_10, %c0_11, %c0_12], %20 {strides = array<i32>} : memref<1x16x8xf32, #tpu.memory_space<vmem>>, vector<1x8x8xf32>,
    %21 = vector.extract_strided_slice %4 {offsets = [0, 0], sizes = [1, 8], strides = [1, 1]} : vector<2x8xf32> to vector<1x8xf32>
    %22 = vector.broadcast %21 : vector<1x8xf32> to vector<8x8xf32>
    %23 = arith.mulf %17, %22 : vector<8x8xf32>
    %cst_13 = arith.constant dense<0.000000e+00> : vector<8xf32>
    %24 = vector.multi_reduction <add>, %23, %cst_13 [1] : vector<8x8xf32> to vector<8xf32>
    %25 = vector.shape_cast %24 : vector<8xf32> to vector<8x1xf32>
    %26 = arith.addf %15, %25 : vector<8x1xf32>
    %27 = arith.mulf %23, %17 : vector<8x8xf32>
    %cst_14 = arith.constant dense<0.000000e+00> : vector<8xf32>
    %28 = vector.multi_reduction <add>, %27, %cst_14 [1] : vector<8x8xf32> to vector<8xf32>
    %29 = vector.shape_cast %28 : vector<8xf32> to vector<8x1xf32>
    %30 = arith.addf %16, %29 : vector<8x1xf32>
    %31 = vector.extract_strided_slice %14 {offsets = [0, 8], sizes = [8, 8], strides = [1, 1]} : vector<8x16xf32> to vector<8x8xf32>
    %c0_15 = arith.constant 0 : index
    %c8 = arith.constant 8 : index
    %c0_16 = arith.constant 0 : index
    %32 = vector.load %arg5[%c0_15, %c8, %c0_16] : memref<1x16x8xf32, #tpu.memory_space<vmem>>, vector<1x8x8xf32>
    %33 = vector.shape_cast %32 : vector<1x8x8xf32> to vector<8x8xf32>
    %34 = vector.shape_cast %31 : vector<8x8xf32> to vector<1x8x8xf32>
    tpu.vector_store %arg5[%c0_15, %c8, %c0_16], %34 {strides = array<i32>} : memref<1x16x8xf32, #tpu.memory_space<vmem>>, vector<1x8x8xf32>,
    %35 = vector.extract_strided_slice %4 {offsets = [1, 0], sizes = [1, 8], strides = [1, 1]} : vector<2x8xf32> to vector<1x8xf32>
    %36 = vector.broadcast %35 : vector<1x8xf32> to vector<8x8xf32>
    %37 = arith.mulf %31, %36 : vector<8x8xf32>
    %cst_17 = arith.constant dense<0.000000e+00> : vector<8xf32>
    %38 = vector.multi_reduction <add>, %37, %cst_17 [1] : vector<8x8xf32> to vector<8xf32>
    %39 = vector.shape_cast %38 : vector<8xf32> to vector<8x1xf32>
    %40 = arith.addf %26, %39 : vector<8x1xf32>
    %41 = arith.mulf %37, %31 : vector<8x8xf32>
    %cst_18 = arith.constant dense<0.000000e+00> : vector<8xf32>
    %42 = vector.multi_reduction <add>, %41, %cst_18 [1] : vector<8x8xf32> to vector<8xf32>
    %43 = vector.shape_cast %42 : vector<8xf32> to vector<8x1xf32>
    %44 = arith.addf %30, %43 : vector<8x1xf32>
    %c0_19 = arith.constant 0 : index
    %c0_20 = arith.constant 0 : index
    %c0_21 = arith.constant 0 : index
    %c0_22 = arith.constant 0 : index
    %45 = vector.load %arg6[%c0_19, %c0_20, %c0_21, %c0_22] : memref<1x1x8x1xf32, #tpu.memory_space<vmem>>, vector<1x1x8x1xf32>
    %46 = vector.shape_cast %45 : vector<1x1x8x1xf32> to vector<8x1xf32>
    %47 = vector.shape_cast %40 : vector<8x1xf32> to vector<1x1x8x1xf32>
    tpu.vector_store %arg6[%c0_19, %c0_20, %c0_21, %c0_22], %47 {strides = array<i32>} : memref<1x1x8x1xf32, #tpu.memory_space<vmem>>, vector<1x1x8x1xf32>,
    %c0_23 = arith.constant 0 : index
    %c0_24 = arith.constant 0 : index
    %c0_25 = arith.constant 0 : index
    %c0_26 = arith.constant 0 : index
    %48 = vector.load %arg7[%c0_23, %c0_24, %c0_25, %c0_26] : memref<1x1x8x1xf32, #tpu.memory_space<vmem>>, vector<1x1x8x1xf32>
    %49 = vector.shape_cast %48 : vector<1x1x8x1xf32> to vector<8x1xf32>
    %50 = vector.shape_cast %44 : vector<8x1xf32> to vector<1x1x8x1xf32>
    tpu.vector_store %arg7[%c0_23, %c0_24, %c0_25, %c0_26], %50 {strides = array<i32>} : memref<1x1x8x1xf32, #tpu.memory_space<vmem>>, vector<1x1x8x1xf32>,
    return
  }
  func.func @transform_0(%arg0: i32, %arg1: i32) -> (i32, i32, i32, i32) {
    %c0_i32 = arith.constant 0 : i32
    %c0_i32_0 = arith.constant 0 : i32
    %c0_i32_1 = arith.constant 0 : i32
    return %arg0, %arg1, %c0_i32, %c0_i32_0 : i32, i32, i32, i32
  }
  func.func @transform_1(%arg0: i32, %arg1: i32) -> (i32, i32) {
    %c0_i32 = arith.constant 0 : i32
    %c0_i32_0 = arith.constant 0 : i32
    %c0_i32_1 = arith.constant 0 : i32
    return %c0_i32, %c0_i32_0 : i32, i32
  }
  func.func @transform_2(%arg0: i32, %arg1: i32) -> (i32, i32, i32) {
    %c0_i32 = arith.constant 0 : i32
    %c0_i32_0 = arith.constant 0 : i32
    return %arg0, %c0_i32, %arg1 : i32, i32, i32
  }
  func.func @transform_3(%arg0: i32, %arg1: i32) -> (i32, i32, i32) {
    %c0_i32 = arith.constant 0 : i32
    %c0_i32_0 = arith.constant 0 : i32
    return %arg0, %c0_i32, %arg1 : i32, i32, i32
  }
  func.func @transform_4(%arg0: i32, %arg1: i32) -> (i32, i32, i32, i32) {
    %c0_i32 = arith.constant 0 : i32
    %c0_i32_0 = arith.constant 0 : i32
    %c0_i32_1 = arith.constant 0 : i32
    return %arg0, %arg1, %c0_i32, %c0_i32_0 : i32, i32, i32, i32
  }
  func.func @transform_5(%arg0: i32, %arg1: i32) -> (i32, i32, i32, i32) {
    %c0_i32 = arith.constant 0 : i32
    %c0_i32_0 = arith.constant 0 : i32
    %c0_i32_1 = arith.constant 0 : i32
    return %arg0, %arg1, %c0_i32, %c0_i32_0 : i32, i32, i32, i32
  }
}

</mosaic_0001>

<llo_original>
// kernel: tpu_custom_call.1
$region0: #{tpu_custom_call.1}
  #allocation0 [shape = 'u32[]', space=smem, size = 0x4, offset = 0x4, fixed_abs, tag = 'smem constant byte address 0x4 - core index']
  #allocation1 [shape = 'u32[144,128]{1,0:T(1,128)}', space=vmem, size = 0x12000, scoped, tag = 'internal scratch']
  %s0 = inlined_call_operand.hbm [shape: f32[2,1,8,9], index: 0, kind: input, shape index: {}]
  %s1 = inlined_call_operand.hbm [shape: f32[8,12], index: 1, kind: input, shape index: {}]
  %s2 = inlined_call_operand.hbm [shape: f32[2,2,8], index: 2, kind: input, shape index: {}]
  %s3 = inlined_call_operand.vmem [shape: f32[2,16,8], index: 3, kind: output, shape index: {0}]
  %s4 = inlined_call_operand.vmem [shape: f32[2,1,8,1], index: 4, kind: output, shape index: {1}]
  %s5 = inlined_call_operand.vmem [shape: f32[2,1,8,1], index: 5, kind: output, shape index: {2}]
  %6 = xla_tuple %s3, %s4, %s5
  %s7 = sld [smem:[#allocation0]]
  $region73: #{tpu_custom_call.1} parent=0
    _
  %s9 = ssub.s32 1, %s7
  %s10 = scalar_select 0, %s9, %s7
  $region1: #{tpu_custom_call.1} parent=0
    #allocation2 [shape = 'u8[8192]{0}', space=vmem, size = 0x2000, scoped, tag = 'input window, operand 0']
    #allocation3 [shape = 's32[2]{0}', space=sflag, size = 0x8, scoped, tag = 'scoped memory for tpu_custom_call.1']
    #allocation4 [shape = 'u8[4096]{0}', space=vmem, size = 0x1000, scoped, tag = 'input window, operand 1, single buffered']
    #allocation5 [shape = 's32[1]{0}', space=sflag, size = 0x4, scoped, tag = 'scoped memory for tpu_custom_call.1']
    #allocation6 [shape = 'u8[2048]{0}', space=vmem, size = 0x800, scoped, tag = 'input window, operand 2']
    %11 = vsyncpa [#allocation3], 0
    %s12 = scalar_lea.sflag [#allocation3], 1
    %13 = vsyncpa %s12, 0
    %14 = vsyncpa [#allocation5], 0
    loop: start=0, step=1, limit=4
    $region2: #{tpu_custom_call.1} parent=1 // loop_pre_header
      _
    $region3: #{tpu_custom_call.1} parent=1 // loop_header
      %s16 = sphi 0, %s20
      %p17 = scmp.ge.s32.totalorder %s16, 4
      %s23 = sphi 0, %s35
      %s24 = sphi 0, %s31
      %s25 = sphi 0, %s23
      %s26 = sphi 0, %s24
      %s27 = sphi 0, %s25
      %s28 = sphi 0, %s26
      %s40 = sphi 0, %s42
      %s43 = sphi 0, %s40
      %s44 = sphi 0, %s43
      %s60 = sphi 0, %s44
      %s64 = sphi 0, %s64
      %s66 = sphi 0, %s64
      %s67 = sphi 0, %s66
      %s81 = sphi 0, %s67
      %s89 = sphi 0, %s91
      %s92 = sphi 0, %s89
      %s93 = sphi 0, %s92
      %s109 = sphi 0, %s93
      %s117 = sphi 0, %s119
      %s120 = sphi 0, %s117
      %s121 = sphi 0, %s120
      %s137 = sphi 0, %s121
      %s145 = sphi 0, %s147
      %s148 = sphi 0, %s145
      %s149 = sphi 0, %s148
      %s165 = sphi 0, %s149
      %s173 = sphi 0, %s175
      %s176 = sphi 0, %s173
      %s177 = sphi 0, %s176
      %s193 = sphi 0, %s177
    $region4: #{tpu_custom_call.1} parent=1 // loop_header_branch
      %19 = sbr.rel (%p17) target = $region8
    $region5: #{tpu_custom_call.1} parent=1 // loop_body
      %s21 = ssub.s32 %s16, 1
      %s22 = ssub.s32 %s16, 2
      %s29 = sadd.s32 1, %s24
      %p30 = scmp.ge.s32.totalorder %s29, 1
      %s31 = scalar_select %p30, 0, %s29
      %s32 = sadd.s32 1, %s23
      %s33 = scalar_select %p30, %s32, %s23
      %p34 = scmp.ge.s32.totalorder %s33, 2
      %s35 = scalar_select %p34, 0, %s33
      %s36 = ssub.s32 %s23, %s35
      %s37 = ssub.s32 %s24, %s31
      %s38 = sor.u32 %s36, %s37
      %p39 = scmp.eq.s32.totalorder %s38, 0
      %s41 = sadd.s32 %s40, 1
      %s42 = scalar_select %p39, %s40, %s41
      %p45 = pneg %p39
      %p46 = scmp.eq.s32.totalorder %s16, 1
      %p47 = por %p45, %p46
      %p48 = scmp.ne.s32.totalorder %s40, %s43
      %p49 = scmp.eq.s32.totalorder %s16, 0
      %p50 = por %p48, %p49
      %p51 = scmp.ne.s32.totalorder %s40, %s43
      %p52 = scmp.eq.s32.totalorder %s21, 1
      %p53 = por %p51, %p52
      %p54 = scmp.ne.s32.totalorder %s43, %s44
      %p55 = scmp.eq.s32.totalorder %s21, 0
      %p56 = por %p54, %p55
      %p57 = scmp.ne.s32.totalorder %s43, %s44
      %p58 = scmp.eq.s32.totalorder %s22, 1
      %p59 = por %p57, %p58
      %p61 = scmp.ne.s32.totalorder %s44, %s60
      %p62 = scmp.eq.s32.totalorder %s22, 0
      %p63 = por %p61, %p62
      %s65 = sadd.s32 %s64, 1
      %p68 = scmp.eq.s32.totalorder %s16, 1
      %p69 = scmp.ne.s32.totalorder %s64, %s66
      %p70 = scmp.eq.s32.totalorder %s16, 0
      %p71 = por %p69, %p70
      %p72 = scmp.ne.s32.totalorder %s64, %s66
      %p73 = scmp.eq.s32.totalorder %s21, 1
      %p74 = por %p72, %p73
      %p75 = scmp.ne.s32.totalorder %s66, %s67
      %p76 = scmp.eq.s32.totalorder %s21, 0
      %p77 = por %p75, %p76
      %p78 = scmp.ne.s32.totalorder %s66, %s67
      %p79 = scmp.eq.s32.totalorder %s22, 1
      %p80 = por %p78, %p79
      %p82 = scmp.ne.s32.totalorder %s67, %s81
      %p83 = scmp.eq.s32.totalorder %s22, 0
      %p84 = por %p82, %p83
      %s85 = ssub.s32 %s23, %s35
      %s86 = ssub.s32 %s24, %s31
      %s87 = sor.u32 %s85, %s86
      %p88 = scmp.eq.s32.totalorder %s87, 0
      %s90 = sadd.s32 %s89, 1
      %s91 = scalar_select %p88, %s89, %s90
      %p94 = pneg %p88
      %p95 = scmp.eq.s32.totalorder %s16, 1
      %p96 = por %p94, %p95
      %p97 = scmp.ne.s32.totalorder %s89, %s92
      %p98 = scmp.eq.s32.totalorder %s16, 0
      %p99 = por %p97, %p98
      %p100 = scmp.ne.s32.totalorder %s89, %s92
      %p101 = scmp.eq.s32.totalorder %s21, 1
      %p102 = por %p100, %p101
      %p103 = scmp.ne.s32.totalorder %s92, %s93
      %p104 = scmp.eq.s32.totalorder %s21, 0
      %p105 = por %p103, %p104
      %p106 = scmp.ne.s32.totalorder %s92, %s93
      %p107 = scmp.eq.s32.totalorder %s22, 1
      %p108 = por %p106, %p107
      %p110 = scmp.ne.s32.totalorder %s93, %s109
      %p111 = scmp.eq.s32.totalorder %s22, 0
      %p112 = por %p110, %p111
      %s113 = ssub.s32 %s23, %s35
      %s114 = ssub.s32 %s24, %s31
      %s115 = sor.u32 %s113, %s114
      %p116 = scmp.eq.s32.totalorder %s115, 0
      %s118 = sadd.s32 %s117, 1
      %s119 = scalar_select %p116, %s117, %s118
      %p122 = pneg %p116
      %p123 = scmp.eq.s32.totalorder %s16, 1
      %p124 = por %p122, %p123
      %p125 = scmp.ne.s32.totalorder %s117, %s120
      %p126 = scmp.eq.s32.totalorder %s16, 0
      %p127 = por %p125, %p126
      %p128 = scmp.ne.s32.totalorder %s117, %s120
      %p129 = scmp.eq.s32.totalorder %s21, 1
      %p130 = por %p128, %p129
      %p131 = scmp.ne.s32.totalorder %s120, %s121
      %p132 = scmp.eq.s32.totalorder %s21, 0
      %p133 = por %p131, %p132
      %p134 = scmp.ne.s32.totalorder %s120, %s121
      %p135 = scmp.eq.s32.totalorder %s22, 1
      %p136 = por %p134, %p135
      %p138 = scmp.ne.s32.totalorder %s121, %s137
      %p139 = scmp.eq.s32.totalorder %s22, 0
      %p140 = por %p138, %p139
      %s141 = ssub.s32 %s23, %s35
      %s142 = ssub.s32 %s24, %s31
      %s143 = sor.u32 %s141, %s142
      %p144 = scmp.eq.s32.totalorder %s143, 0
      %s146 = sadd.s32 %s145, 1
      %s147 = scalar_select %p144, %s145, %s146
      %p150 = pneg %p144
      %p151 = scmp.eq.s32.totalorder %s16, 1
      %p152 = por %p150, %p151
      %p153 = scmp.ne.s32.totalorder %s145, %s148
      %p154 = scmp.eq.s32.totalorder %s16, 0
      %p155 = por %p153, %p154
      %p156 = scmp.ne.s32.totalorder %s145, %s148
      %p157 = scmp.eq.s32.totalorder %s21, 1
      %p158 = por %p156, %p157
      %p159 = scmp.ne.s32.totalorder %s148, %s149
      %p160 = scmp.eq.s32.totalorder %s21, 0
      %p161 = por %p159, %p160
      %p162 = scmp.ne.s32.totalorder %s148, %s149
      %p163 = scmp.eq.s32.totalorder %s22, 1
      %p164 = por %p162, %p163
      %p166 = scmp.ne.s32.totalorder %s149, %s165
      %p167 = scmp.eq.s32.totalorder %s22, 0
      %p168 = por %p166, %p167
      %s169 = ssub.s32 %s23, %s35
      %s170 = ssub.s32 %s24, %s31
      %s171 = sor.u32 %s169, %s170
      %p172 = scmp.eq.s32.totalorder %s171, 0
      %s174 = sadd.s32 %s173, 1
      %s175 = scalar_select %p172, %s173, %s174
      %p178 = pneg %p172
      %p179 = scmp.eq.s32.totalorder %s16, 1
      %p180 = por %p178, %p179
      %p181 = scmp.ne.s32.totalorder %s173, %s176
      %p182 = scmp.eq.s32.totalorder %s16, 0
      %p183 = por %p181, %p182
      %p184 = scmp.ne.s32.totalorder %s173, %s176
      %p185 = scmp.eq.s32.totalorder %s21, 1
      %p186 = por %p184, %p185
      %p187 = scmp.ne.s32.totalorder %s176, %s177
      %p188 = scmp.eq.s32.totalorder %s21, 0
      %p189 = por %p187, %p188
      %p190 = scmp.ne.s32.totalorder %s176, %s177
      %p191 = scmp.eq.s32.totalorder %s22, 1
      %p192 = por %p190, %p191
      %p194 = scmp.ne.s32.totalorder %s177, %s193
      %p195 = scmp.eq.s32.totalorder %s22, 0
      %p196 = por %p194, %p195
      %p197 = scmp.le.s32.totalorder 1, %s16
      %p198 = scmp.lt.s32.totalorder %s16, 3
      %p199 = pnand %p197, %p198
      %p200 = pneg %p199
      // Predicated region
      $region9: #{tpu_custom_call.1} parent=5 // pred_check
        _
      $region10: #{tpu_custom_call.1} parent=5 // pred_check_branch
        %202 = sbr.rel (%p199) target = $region12
      $region11: #{tpu_custom_call.1} parent=5 // pred_region
        %s203 = ssub.s32 %s16, 1
        // Predicated region
        $region13: #{tpu_custom_call.1} parent=11 // pred_check
          %p204 = pneg %p77
        $region14: #{tpu_custom_call.1} parent=11 // pred_check_branch
          %206 = sbr.rel (%p204) target = $region16
        $region15: #{tpu_custom_call.1} parent=11 // pred_region
          %s208 = ssub.s32 128, 128
          %209 = vsyncadd [#allocation5], %s208
          %s211 = sshll.u32 [#allocation4], 4
          %s212 = int_to_ptr.vmem [resolvable:$true] %s211
          %214 = dma.hbm_to_vmem [thread:$0]  %s1, 128, %s212, [#allocation5]
        $region16: #{tpu_custom_call.1} parent=11 // pred_fallthru
          _
      $region12: #{tpu_custom_call.1} parent=5 // pred_fallthru
        _
      %p215 = scmp.lt.s32.totalorder %s16, 2
      // Predicated region
      $region17: #{tpu_custom_call.1} parent=5 // pred_check
        %p216 = pneg %p215
      $region18: #{tpu_custom_call.1} parent=5 // pred_check_branch
        %218 = sbr.rel (%p216) target = $region20
      $region19: #{tpu_custom_call.1} parent=5 // pred_region
        // Predicated region
        $region21: #{tpu_custom_call.1} parent=19 // pred_check
          %p219 = pneg %p50
        $region22: #{tpu_custom_call.1} parent=19 // pred_check_branch
          %221 = sbr.rel (%p219) target = $region24
        $region23: #{tpu_custom_call.1} parent=19 // pred_region
          %s222 = sand.u32 %s16, 1
          %s223 = scalar_lea.sflag [#allocation3], %s222
          %s224 = sand.u32 %s40, 1
          %s225 = smul.addr %s224, 8
          %s226 = scalar_lea.vmem [#allocation2], %s225
          %s228 = ssub.s32 128, 128
          %229 = vsyncadd %s223, %s228
          %s230 = sadd.s32 %s24, %s23
          %s231 = smul.addr %s230, 128
          %s232 = scalar_lea.hbm %s0, %s231
          %s234 = sshll.u32 %s226, 4
          %s235 = int_to_ptr.vmem [resolvable:$true] %s234
          %237 = dma.hbm_to_vmem [thread:$0]  %s232, 128, %s235, %s223
        $region24: #{tpu_custom_call.1} parent=19 // pred_fallthru
          _
        // Predicated region
        $region25: #{tpu_custom_call.1} parent=19 // pred_check
          %p238 = pneg %p99
        $region26: #{tpu_custom_call.1} parent=19 // pred_check_branch
          %240 = sbr.rel (%p238) target = $region28
        $region27: #{tpu_custom_call.1} parent=19 // pred_region
          %s241 = sand.u32 %s16, 1
          %s242 = scalar_lea.sflag [#allocation3], %s241
          %s243 = sand.u32 %s89, 1
          %s244 = smul.addr %s243, 2
          %s245 = scalar_lea.vmem [#allocation6], %s244
          %s247 = ssub.s32 32, 32
          %248 = vsyncadd %s242, %s247
          %s249 = sadd.s32 %s24, %s23
          %s250 = smul.addr %s249, 32
          %s251 = scalar_lea.hbm %s2, %s250
          %s253 = sshll.u32 %s245, 4
          %s254 = int_to_ptr.vmem [resolvable:$true] %s253
          %256 = dma.hbm_to_vmem [thread:$0]  %s251, 32, %s254, %s242
        $region28: #{tpu_custom_call.1} parent=19 // pred_fallthru
          _
      $region20: #{tpu_custom_call.1} parent=5 // pred_fallthru
        _
      %p257 = scmp.le.s32.totalorder 1, %s16
      %p258 = scmp.lt.s32.totalorder %s16, 3
      %p259 = pnand %p257, %p258
      %p260 = pneg %p259
      // Predicated region
      $region29: #{tpu_custom_call.1} parent=5 // pred_check
        _
      $region30: #{tpu_custom_call.1} parent=5 // pred_check_branch
        %262 = sbr.rel (%p259) target = $region32
      $region31: #{tpu_custom_call.1} parent=5 // pred_region
        %s263 = ssub.s32 %s16, 1
        %s264 = sand.u32 %s21, 1
        %s265 = scalar_lea.sflag [#allocation3], %s264
        %s266 = sand.u32 %s43, 1
        %s267 = smul.addr %s266, 8
        %s268 = scalar_lea.vmem [#allocation2], %s267
        // Predicated region
        $region33: #{tpu_custom_call.1} parent=31 // pred_check
          %p269 = pneg %p56
        $region34: #{tpu_custom_call.1} parent=31 // pred_check_branch
          %271 = sbr.rel (%p269) target = $region36
        $region35: #{tpu_custom_call.1} parent=31 // pred_region
          %272 = dma.done %s265, 128
        $region36: #{tpu_custom_call.1} parent=31 // pred_fallthru
          _
        // Predicated region
        $region37: #{tpu_custom_call.1} parent=31 // pred_check
          %p273 = pneg %p77
        $region38: #{tpu_custom_call.1} parent=31 // pred_check_branch
          %275 = sbr.rel (%p273) target = $region40
        $region39: #{tpu_custom_call.1} parent=31 // pred_region
          %276 = dma.done [#allocation5], 128
        $region40: #{tpu_custom_call.1} parent=31 // pred_fallthru
          _
        %s277 = sand.u32 %s21, 1
        %s278 = scalar_lea.sflag [#allocation3], %s277
        %s279 = sand.u32 %s92, 1
        %s280 = smul.addr %s279, 2
        %s281 = scalar_lea.vmem [#allocation6], %s280
        // Predicated region
        $region41: #{tpu_custom_call.1} parent=31 // pred_check
          %p282 = pneg %p105
        $region42: #{tpu_custom_call.1} parent=31 // pred_check_branch
          %284 = sbr.rel (%p282) target = $region44
        $region43: #{tpu_custom_call.1} parent=31 // pred_region
          %285 = dma.done %s278, 32
        $region44: #{tpu_custom_call.1} parent=31 // pred_fallthru
          _
        %s286 = sand.u32 %s21, 1
        %s287 = scalar_lea.sflag [#allocation3], %s286
        %s288 = sand.u32 %s43, 1
        %s289 = smul.addr %s288, 8
        %s290 = scalar_lea.vmem [#allocation2], %s289
        %p291 = pneg %p56
        %p292 = pneg %p53
        %p293 = pneg %p77
        %p294 = pneg %p74
        %s295 = sand.u32 %s21, 1
        %s296 = scalar_lea.sflag [#allocation3], %s295
        %s297 = sand.u32 %s92, 1
        %s298 = smul.addr %s297, 2
        %s299 = scalar_lea.vmem [#allocation6], %s298
        %p300 = pneg %p105
        %p301 = pneg %p102
        %p302 = pneg %p133
        %p303 = pneg %p130
        %p304 = scmp.lt.s32.totalorder %s25, 1
        %s305 = scalar_select %p304, %s25, 1
        %p306 = scmp.lt.s32.totalorder %s26, 0
        %s307 = scalar_select %p306, %s26, 0
        %s308 = smul.addr %s305, 2
        %s309 = sadd.s32 %s307, %s308
        %s310 = smul.addr %s309, 8
        %s311 = scalar_lea.vmem %s3, %s310
        %p312 = pneg %p161
        %p313 = pneg %p158
        %p314 = scmp.lt.s32.totalorder %s25, 1
        %s315 = scalar_select %p314, %s25, 1
        %p316 = scmp.lt.s32.totalorder %s26, 0
        %s317 = scalar_select %p316, %s26, 0
        %s318 = sadd.s32 %s317, %s315
        %s319 = smul.addr %s318, 8
        %s320 = scalar_lea.vmem %s4, %s319
        %p321 = pneg %p189
        %p322 = pneg %p186
        %p323 = scmp.lt.s32.totalorder %s25, 1
        %s324 = scalar_select %p323, %s25, 1
        %p325 = scmp.lt.s32.totalorder %s26, 0
        %s326 = scalar_select %p325, %s26, 0
        %s327 = sadd.s32 %s326, %s324
        %s328 = smul.addr %s327, 8
        %s329 = scalar_lea.vmem %s5, %s328
        %p330 = scmp.lt.s32.totalorder %s25, 1
        %s331 = scalar_select %p330, %s25, 1
        %p332 = scmp.lt.s32.totalorder %s26, 0
        %s333 = scalar_select %p332, %s26, 0
        %s334 = smul.addr %s331, 2
        %s335 = sadd.s32 %s333, %s334
        %s336 = smul.addr %s335, 8
        %s337 = scalar_lea.vmem %s3, %s336
        %p338 = scmp.lt.s32.totalorder %s25, 1
        %s339 = scalar_select %p338, %s25, 1
        %p340 = scmp.lt.s32.totalorder %s26, 0
        %s341 = scalar_select %p340, %s26, 0
        %s342 = sadd.s32 %s341, %s339
        %s343 = smul.addr %s342, 8
        %s344 = scalar_lea.vmem %s4, %s343
        %p345 = scmp.lt.s32.totalorder %s25, 1
        %s346 = scalar_select %p345, %s25, 1
        %p347 = scmp.lt.s32.totalorder %s26, 0
        %s348 = scalar_select %p347, %s26, 0
        %s349 = sadd.s32 %s348, %s346
        %s350 = smul.addr %s349, 8
        %s351 = scalar_lea.vmem %s5, %s350
        %v352 = vld [vmem:[#allocation4] sm:$0xff]
        %v353 = vld [vmem:[%s268] sm:$0xff]
        %v354 = vld [vmem:[%s281] sm:$0x3]
        %356 = vrot.lane.b32.xlu0 %v353, 127
        %v357 = vpop.permute.xlu0 %356
        %v359 = vrot.slane %v353, 4
        %361 = vrot.lane.b32.xlu0 %v359, 127
        %v362 = vpop.permute.xlu0 %361
        %vm364 = vcmask 1043456
        %v365 = vsel %vm364, %v359, %v362
        %367 = vrot.lane.b32.xlu0 %v365, 8
        %v368 = vpop.permute.xlu0 %367
        %369 = vrot.lane.b32.xlu0 %v362, 8
        %v370 = vpop.permute.xlu0 %369
        %vm373 = vcmask 64512
        %v374 = vsel %vm373, %v353, %v368
        %v375 = vsel %vm373, %v357, %v370
        %vm376 = vcmask 97280
        %v378 = vsel %vm376, %v352, 0
        %v381 = vsel %vm364, %v375, 0
        %383 = vmatprep.subr.mxu0 0.0
        %384 = vmatpush1.msra.mxu0 0.0
        %385 = vmatprep.subr.mxu0 0.0
        %386 = vmatpush1.msra.mxu0 0.0
        %387 = vmatprep.subr.mxu0 0.0
        %388 = vmatpush1.msra.mxu0 0.0
        %389 = vmatprep.subr.mxu0 0.0
        %390 = vmatpush1.msra.mxu0 0.0
        %391 = vmatprep.subr.mxu0 0.0
        %392 = vmatpush1.msra.mxu0 0.0
        %393 = vmatprep.subr.mxu0 0.0
        %394 = vmatpush1.msra.mxu0 0.0
        %395 = vmatprep.subr.mxu0 0.0
        %396 = vmatpush1.msra.mxu0 0.0
        %397 = vmatprep.subr.mxu0 0.0
        %398 = vmatpush1.msra.mxu0 0.0
        %399 = vmatprep.subr.mxu0 0.0
        %400 = vmatpush1.msra.mxu0 0.0
        %401 = vmatprep.subr.mxu0 0.0
        %402 = vmatpush1.msra.mxu0 0.0
        %403 = vmatprep.subr.mxu0 0.0
        %404 = vmatpush1.msra.mxu0 0.0
        %405 = vmatprep.subr.mxu0 0.0
        %406 = vmatpush1.msra.mxu0 0.0
        %407 = vmatprep.subr.mxu0 0.0
        %408 = vmatpush1.msra.mxu0 0.0
        %409 = vmatprep.subr.mxu0 0.0
        %410 = vmatpush1.msra.mxu0 0.0
        %411 = vmatprep.subr.mxu0 0.0
        %412 = vmatpush1.msra.mxu0 %v381
        %413 = vmatprep.subr.mxu0 0.0
        %414 = vmatpush1.msra.mxu0 %v374
        %415 = vmatprep.subr.mxu0 0.0
        %416 = vmatpush2.msra.mxu0 0.0
        %417 = vmatprep.subr.mxu0 0.0
        %418 = vmatpush2.msra.mxu0 0.0
        %419 = vmatprep.subr.mxu0 0.0
        %420 = vmatpush2.msra.mxu0 0.0
        %421 = vmatprep.subr.mxu0 0.0
        %422 = vmatpush2.msra.mxu0 0.0
        %423 = vmatprep.subr.mxu0 0.0
        %424 = vmatpush2.msra.mxu0 0.0
        %425 = vmatprep.subr.mxu0 0.0
        %426 = vmatpush2.msra.mxu0 0.0
        %427 = vmatprep.subr.mxu0 0.0
        %428 = vmatpush2.msra.mxu0 0.0
        %429 = vmatprep.subr.mxu0 0.0
        %430 = vmatpush2.msra.mxu0 0.0
        %431 = vmatprep.subr.mxu0 0.0
        %432 = vmatpush2.msra.mxu0 0.0
        %433 = vmatprep.subr.mxu0 0.0
        %434 = vmatpush2.msra.mxu0 0.0
        %435 = vmatprep.subr.mxu0 0.0
        %436 = vmatpush2.msra.mxu0 0.0
        %437 = vmatprep.subr.mxu0 0.0
        %438 = vmatpush2.msra.mxu0 0.0
        %439 = vmatprep.subr.mxu0 0.0
        %440 = vmatpush2.msra.mxu0 0.0
        %441 = vmatprep.subr.mxu0 0.0
        %442 = vmatpush2.msra.mxu0 0.0
        %443 = vmatprep.subr.mxu0 0.0
        %444 = vmatpush2.msra.mxu0 0.0
        %445 = vmatprep.subr.mxu0 0.0
        %446 = vmatpush2.msra.mxu0 0.0
        %447 = vmatprep.mubr.f32.mxu0 0.0
        %448 = vmatmul.mubr.f32.gmra.mxu0 %v378
        %v449 = vpop.f32.mrf.mxu0
        %v450 = vadd.f32 0.0, %v449
        %v451 = vpop.f32.mrf.mxu0
        %452 = vdwg.mxu0
        %453 = vst.msk [vmem:[%s337] sm:$0xff] %vm373, %v450
        %v454 = vlaneseq
        %v455 = vshrl.u32 %v454, 7
        %v456 = vsub.s32 0, %v455
        %v457 = vrot.slane %v354, %v456
        %v458 = vmul.f32 %v450, %v457
        %v459 = vsel %vm373, %v458, 0.0
        %460 = vadd.xlane.f32.xlu0 %v459
        %v461 = vpop.xlane.xlu0 %460
        %v462 = vadd.f32 %v461, 0.0
        %v463 = vmul.f32 %v458, %v450
        %v464 = vsel %vm373, %v463, 0.0
        %465 = vadd.xlane.f32.xlu0 %v464
        %v466 = vpop.xlane.xlu0 %465
        %v467 = vadd.f32 %v466, 0.0
        %469 = vrot.lane.b32.xlu0 %v450, 120
        %v470 = vpop.permute.xlu0 %469
        %472 = vst.msk [vmem:[%s337 + $0x8] sm:$0xff] %vm373, %v470
        %v473 = vlaneseq
        %v474 = vshrl.u32 %v473, 7
        %v475 = vsub.s32 1, %v474
        %v476 = vrot.slane %v354, %v475
        %478 = vrot.lane.b32.xlu0 %v476, 8
        %v479 = vpop.permute.xlu0 %478
        %v481 = vmul.f32 %v450, %v479
        %483 = vrot.lane.b32.xlu0 %v481, 120
        %v484 = vpop.permute.xlu0 %483
        %v486 = vsel %vm373, %v484, 0.0
        %487 = vadd.xlane.f32.xlu0 %v486
        %v488 = vpop.xlane.xlu0 %487
        %v489 = vadd.f32 %v462, %v488
        %v490 = vmul.f32 %v481, %v450
        %492 = vrot.lane.b32.xlu0 %v490, 120
        %v493 = vpop.permute.xlu0 %492
        %v495 = vsel %vm373, %v493, 0.0
        %496 = vadd.xlane.f32.xlu0 %v495
        %v497 = vpop.xlane.xlu0 %496
        %v498 = vadd.f32 %v467, %v497
        %vm499 = vcmask 7168
        %500 = vst.msk [vmem:[%s344] sm:$0xff] %vm499, %v489
        %501 = vst.msk [vmem:[%s351] sm:$0xff] %vm499, %v498
        %p502 = scmp.lt.s32.totalorder %s25, 1
        %s503 = scalar_select %p502, %s25, 1
        %p504 = scmp.lt.s32.totalorder %s26, 0
        %s505 = scalar_select %p504, %s26, 0
        %s506 = smul.addr %s503, 2
        %s507 = sadd.s32 %s505, %s506
        %s508 = smul.addr %s507, 8
        %s509 = scalar_lea.vmem %s3, %s508
        %p510 = scmp.lt.s32.totalorder %s25, 1
        %s511 = scalar_select %p510, %s25, 1
        %p512 = scmp.lt.s32.totalorder %s26, 0
        %s513 = scalar_select %p512, %s26, 0
        %s514 = sadd.s32 %s513, %s511
        %s515 = smul.addr %s514, 8
        %s516 = scalar_lea.vmem %s4, %s515
        %p517 = scmp.lt.s32.totalorder %s25, 1
        %s518 = scalar_select %p517, %s25, 1
        %p519 = scmp.lt.s32.totalorder %s26, 0
        %s520 = scalar_select %p519, %s26, 0
        %s521 = sadd.s32 %s520, %s518
        %s522 = smul.addr %s521, 8
        %s523 = scalar_lea.vmem %s5, %s522
        // Predicated region
        $region45: #{tpu_custom_call.1} parent=31 // pred_check
          %p524 = pneg %p130
        $region46: #{tpu_custom_call.1} parent=31 // pred_check_branch
          %526 = sbr.rel (%p524) target = $region48
        $region47: #{tpu_custom_call.1} parent=31 // pred_region
          _
        $region48: #{tpu_custom_call.1} parent=31 // pred_fallthru
          _
        // Predicated region
        $region49: #{tpu_custom_call.1} parent=31 // pred_check
          %p527 = pneg %p158
        $region50: #{tpu_custom_call.1} parent=31 // pred_check_branch
          %529 = sbr.rel (%p527) target = $region52
        $region51: #{tpu_custom_call.1} parent=31 // pred_region
          _
        $region52: #{tpu_custom_call.1} parent=31 // pred_fallthru
          _
        // Predicated region
        $region53: #{tpu_custom_call.1} parent=31 // pred_check
          %p530 = pneg %p186
        $region54: #{tpu_custom_call.1} parent=31 // pred_check_branch
          %532 = sbr.rel (%p530) target = $region56
        $region55: #{tpu_custom_call.1} parent=31 // pred_region
          _
        $region56: #{tpu_custom_call.1} parent=31 // pred_fallthru
          _
      $region32: #{tpu_custom_call.1} parent=5 // pred_fallthru
        _
      %p533 = scmp.le.s32.totalorder 2, %s16
      // Predicated region
      $region57: #{tpu_custom_call.1} parent=5 // pred_check
        %p534 = pneg %p533
      $region58: #{tpu_custom_call.1} parent=5 // pred_check_branch
        %536 = sbr.rel (%p534) target = $region60
      $region59: #{tpu_custom_call.1} parent=5 // pred_region
        %s537 = ssub.s32 %s16, 2
        // Predicated region
        $region61: #{tpu_custom_call.1} parent=59 // pred_check
          %p538 = pneg %p136
        $region62: #{tpu_custom_call.1} parent=59 // pred_check_branch
          %540 = sbr.rel (%p538) target = $region64
        $region63: #{tpu_custom_call.1} parent=59 // pred_region
          %p541 = scmp.lt.s32.totalorder %s27, 1
          %s542 = scalar_select %p541, %s27, 1
          %p543 = scmp.lt.s32.totalorder %s28, 0
          %s544 = scalar_select %p543, %s28, 0
          %s545 = smul.addr %s542, 2
          %s546 = sadd.s32 %s544, %s545
          %s547 = smul.addr %s546, 8
          %s548 = scalar_lea.vmem %s3, %s547
        $region64: #{tpu_custom_call.1} parent=59 // pred_fallthru
          _
        // Predicated region
        $region65: #{tpu_custom_call.1} parent=59 // pred_check
          %p549 = pneg %p164
        $region66: #{tpu_custom_call.1} parent=59 // pred_check_branch
          %551 = sbr.rel (%p549) target = $region68
        $region67: #{tpu_custom_call.1} parent=59 // pred_region
          %p552 = scmp.lt.s32.totalorder %s27, 1
          %s553 = scalar_select %p552, %s27, 1
          %p554 = scmp.lt.s32.totalorder %s28, 0
          %s555 = scalar_select %p554, %s28, 0
          %s556 = sadd.s32 %s555, %s553
          %s557 = smul.addr %s556, 8
          %s558 = scalar_lea.vmem %s4, %s557
        $region68: #{tpu_custom_call.1} parent=59 // pred_fallthru
          _
        // Predicated region
        $region69: #{tpu_custom_call.1} parent=59 // pred_check
          %p559 = pneg %p192
        $region70: #{tpu_custom_call.1} parent=59 // pred_check_branch
          %561 = sbr.rel (%p559) target = $region72
        $region71: #{tpu_custom_call.1} parent=59 // pred_region
          %p562 = scmp.lt.s32.totalorder %s27, 1
          %s563 = scalar_select %p562, %s27, 1
          %p564 = scmp.lt.s32.totalorder %s28, 0
          %s565 = scalar_select %p564, %s28, 0
          %s566 = sadd.s32 %s565, %s563
          %s567 = smul.addr %s566, 8
          %s568 = scalar_lea.vmem %s5, %s567
        $region72: #{tpu_custom_call.1} parent=59 // pred_fallthru
          _
      $region60: #{tpu_custom_call.1} parent=5 // pred_fallthru
        _
    $region6: #{tpu_custom_call.1} parent=1 // loop_footer
      %s20 = sadd.s32 1, %s16
    $region7: #{tpu_custom_call.1} parent=1 // loop_footer_branch
      %15 = sbr.rel target = $region3
    $region8: #{tpu_custom_call.1} parent=1 // loop_exit
      _
    %569 = vsyncpa [#allocation3], 1
    %s570 = scalar_lea.sflag [#allocation3], 1
    %571 = vsyncpa %s570, 1
    %572 = vsyncpa [#allocation5], 1

</llo_original>
